<compile_context>
chip_gen: v7x
topology: tpu7x:2x2x1
jax: 0.10.0
libtpu: 0.0.40
codegen_flags: <defaults>
</compile_context>

<pallas_src>
import jax
import jax.numpy as jnp
from jax.experimental import pallas as pl
from jax.experimental.pallas import tpu as pltpu


# --------------------------------------------------------------------------
# Kernel: one lane-dense MXU matmul per tile (propagation + 1x1 conv fused).
# --------------------------------------------------------------------------
def _prop_matmul_kernel(k_ref, b_ref, x_ref, o_ref):
    acc = jnp.dot(k_ref[...], x_ref[...], preferred_element_type=jnp.float32)
    o_ref[...] = (acc + b_ref[...]).astype(o_ref.dtype)


def _round_up(x, m):
    return ((x + m - 1) // m) * m


def _choose_tile_and_vmem(m_pad, rows_in, rows_out, in_bytes, out_bytes):
    """Largest lane tile (multiple of 128, divides m_pad, <= 2048) whose
    double-buffered footprint fits a budget safe on v7x's 64 MiB VMEM."""

    def footprint(tm):
        tiles = 2 * tm * (rows_in * in_bytes + rows_out * out_bytes)  # 2x-buffered x / out tiles
        fixed = rows_out * rows_in * in_bytes + rows_out * 4          # K + bias (resident)
        acc = rows_out * tm * 4                                       # f32 matmul result
        return tiles + fixed + acc

    budget = 24 << 20
    # Keep >= 2 grid steps whenever the padded axis allows it so the
    # "parallel" axis can shard across v7x's two TensorCores.
    max_tm = m_pad if m_pad < 256 else m_pad // 2
    tm, cand = 128, 256
    while cand <= min(2048, max_tm):
        if m_pad % cand == 0 and footprint(cand) <= budget:
            tm = cand
        cand *= 2
    vmem_bytes = int(min(40 << 20, max(2 * footprint(tm) + (4 << 20), 16 << 20)))
    return tm, vmem_bytes


# --------------------------------------------------------------------------
# Wrapper
# --------------------------------------------------------------------------
def prop_forward(x, adj, weight, bias, *, gdep, alpha, compute_dtype=None):
    """x: (B, C_in, N, T), adj: (N, N), weight: (C_out, C_in), bias: (C_out,).

    compute_dtype: dtype for the matmul operands stored in HBM / fed to the
    MXU (accumulation is always f32). Use jnp.bfloat16 on v6e/v7x when the
    accuracy budget allows; default f32 matches the PyTorch reference tightly.
    """
    B, C_in, N, T = x.shape
    C_out = weight.shape[0]
    out_dtype = x.dtype
    compute_dtype = jnp.dtype(compute_dtype) if compute_dtype is not None else jnp.dtype(jnp.float32)

    f32 = jnp.float32
    eye = jnp.eye(N, dtype=f32)

    # ---- hoisted: exact row-normalize + gdep folding (tiny (N,N) work) ------
    a = adj.astype(f32) + eye
    a = a / jnp.sum(a, axis=1, keepdims=True)
    # h_gdep = P @ x with P = M^gdep + alpha * sum_{k<gdep} M^k, M = (1-alpha)*a
    m = (1.0 - alpha) * a
    pk, acc = eye, jnp.zeros_like(a)
    for _ in range(int(gdep)):
        acc = acc + pk
        pk = m @ pk
    P = pk + alpha * acc                                              # (N, N)

    # ---- fuse the 1x1 conv into the same matmul: K = kron(W, P) -------------
    K = jnp.kron(weight.astype(f32), P).astype(compute_dtype)         # (C_out*N, C_in*N)
    b_vec = jnp.repeat(bias.astype(f32), N).reshape(C_out * N, 1)     # (C_out*N, 1)

    # ---- lane-dense layout: rows = (C_in,N), lanes = padded (B,T) -----------
    M = B * T
    M_pad = _round_up(M, 128)
    x2 = jnp.transpose(x, (1, 2, 0, 3)).reshape(C_in * N, M).astype(compute_dtype)
    if M_pad != M:
        x2 = jnp.pad(x2, ((0, 0), (0, M_pad - M)))

    TM, vmem_bytes = _choose_tile_and_vmem(
        M_pad, C_in * N, C_out * N, compute_dtype.itemsize, jnp.dtype(out_dtype).itemsize)
    num_tiles = M_pad // TM

    out2 = pl.pallas_call(
        _prop_matmul_kernel,
        grid=(num_tiles,),
        in_specs=[
            pl.BlockSpec((C_out * N, C_in * N), lambda j: (0, 0)),    # K (stays resident)
            pl.BlockSpec((C_out * N, 1), lambda j: (0, 0)),           # bias column
            pl.BlockSpec((C_in * N, TM), lambda j: (0, j)),           # x lane tile
        ],
        out_specs=pl.BlockSpec((C_out * N, TM), lambda j: (0, j)),
        out_shape=jax.ShapeDtypeStruct((C_out * N, M_pad), out_dtype),
        compiler_params=pltpu.CompilerParams(
            dimension_semantics=("parallel",),
            vmem_limit_bytes=vmem_bytes),
    )(K, b_vec, x2)

    # drop padding, back to the PyTorch NCHW convention (B, C_out, N, T).
    out2 = out2[:, :M]
    return jnp.transpose(out2.reshape(C_out, N, B, T), (2, 0, 1, 3))


# --------------------------------------------------------------------------
# Pure-JAX reference (for correctness check only)
# --------------------------------------------------------------------------
def prop_reference(x, adj, weight, bias, *, gdep, alpha):
    N = adj.shape[0]
    a = adj + jnp.eye(N, dtype=adj.dtype)
    a = a / jnp.sum(a, axis=1, keepdims=True)
    h = x
    for _ in range(gdep):
        h = alpha * x + (1.0 - alpha) * jnp.einsum('ncwl,vw->ncvl', h, a)
    ho = jnp.einsum('oc,ncvl->novl', weight, h) + bias[None, :, None, None]
    return ho


if __name__ == "__main__":
    # Module hyperparams (dropout is defined in __init__ but unused in forward).
    B, C_IN, C_OUT, N, T = 2, 4, 8, 16, 8
    GDEP, ALPHA = 2, 0.05

    key = jax.random.PRNGKey(0)
    kx, ka, kw, kb = jax.random.split(key, 4)

    x = jax.random.normal(kx, (B, C_IN, N, T), dtype=jnp.float32)
    adj = jax.random.uniform(ka, (N, N), dtype=jnp.float32)           # non-negative adjacency
    # Conv2d(c_in, c_out, kernel_size=(1,1)) params -> (C_out, C_in) weight + (C_out,) bias.
    weight = jax.random.normal(kw, (C_OUT, C_IN), dtype=jnp.float32) * 0.1
    bias = jax.random.normal(kb, (C_OUT,), dtype=jnp.float32) * 0.1

    ref = prop_reference(x, adj, weight, bias, gdep=GDEP, alpha=ALPHA)

    # f32 path (exact-division normalization, f32 MXU inputs): tight tolerance.
    out = prop_forward(x, adj, weight, bias, gdep=GDEP, alpha=ALPHA)
    out = jax.block_until_ready(out)
    assert out.shape == (B, C_OUT, N, T)
    assert jnp.allclose(out, ref, atol=1e-3, rtol=1e-3), "f32 kernel mismatch vs reference"

    # bf16-operand path (the v6e/v7x memory-bandwidth optimization): looser tolerance.
    out_bf16 = prop_forward(x, adj, weight, bias, gdep=GDEP, alpha=ALPHA,
                            compute_dtype=jnp.bfloat16)
    out_bf16 = jax.block_until_ready(out_bf16)
    assert jnp.allclose(out_bf16, ref, atol=2e-2, rtol=2e-2), "bf16 kernel mismatch vs reference"

    print("KERNEL_OK")
</pallas_src>

<mosaic_0001>
module attributes {stable_mosaic.version = 11 : i64} {
  func.func @_prop_matmul_kernel(%arg0: i32, %arg1: memref<128x64xf32, #tpu.memory_space<vmem>>, %arg2: memref<128x1xf32, #tpu.memory_space<vmem>>, %arg3: memref<64x128xf32, #tpu.memory_space<vmem>>, %arg4: memref<128x128xf32, #tpu.memory_space<vmem>>) attributes {dimension_semantics = [#tpu.dimension_semantics<parallel>], iteration_bounds = array<i64: 1>, scalar_prefetch = 0 : i64, scratch_operands = 0 : i64, tpu.core_type = #tpu.core_type<tc>, window_params = [{pipeline_mode = #tpu.pipeline_mode<synchronous>, transform_indices = @transform_0, window_bounds = array<i64: 128, 64>}, {pipeline_mode = #tpu.pipeline_mode<synchronous>, transform_indices = @transform_1, window_bounds = array<i64: 128, 1>}, {transform_indices = @transform_2, window_bounds = array<i64: 64, 128>}, {transform_indices = @transform_3, window_bounds = array<i64: 128, 128>}]} {
    %c0 = arith.constant 0 : index
    %c0_0 = arith.constant 0 : index
    %0 = vector.load %arg1[%c0, %c0_0] : memref<128x64xf32, #tpu.memory_space<vmem>>, vector<128x64xf32>
    %c0_1 = arith.constant 0 : index
    %c0_2 = arith.constant 0 : index
    %1 = vector.load %arg3[%c0_1, %c0_2] : memref<64x128xf32, #tpu.memory_space<vmem>>, vector<64x128xf32>
    %cst = arith.constant dense<0.000000e+00> : vector<128x128xf32>
    %2 = tpu.matmul %0, %1, %cst {dimension_numbers = #tpu.dot_dimension_numbers<[1], [0], [0], [1], [0, 0, 1, 1], [], []>} : vector<128x64xf32>, vector<64x128xf32>, vector<128x128xf32> -> vector<128x128xf32>
    %c0_3 = arith.constant 0 : index
    %c0_4 = arith.constant 0 : index
    %3 = vector.load %arg2[%c0_3, %c0_4] : memref<128x1xf32, #tpu.memory_space<vmem>>, vector<128x1xf32>
    %4 = vector.broadcast %3 : vector<128x1xf32> to vector<128x128xf32>
    %5 = arith.addf %2, %4 : vector<128x128xf32>
    %c0_5 = arith.constant 0 : index
    %c0_6 = arith.constant 0 : index
    %6 = vector.load %arg4[%c0_5, %c0_6] : memref<128x128xf32, #tpu.memory_space<vmem>>, vector<128x128xf32>
    tpu.vector_store %arg4[%c0_5, %c0_6], %5 {strides = array<i32>} : memref<128x128xf32, #tpu.memory_space<vmem>>, vector<128x128xf32>,
    return
  }
  func.func @transform_0(%arg0: i32) -> (i32, i32) {
    %c0_i32 = arith.constant 0 : i32
    %c0_i32_0 = arith.constant 0 : i32
    %c0_i32_1 = arith.constant 0 : i32
    return %c0_i32, %c0_i32_0 : i32, i32
  }
  func.func @transform_1(%arg0: i32) -> (i32, i32) {
    %c0_i32 = arith.constant 0 : i32
    %c0_i32_0 = arith.constant 0 : i32
    %c0_i32_1 = arith.constant 0 : i32
    return %c0_i32, %c0_i32_0 : i32, i32
  }
  func.func @transform_2(%arg0: i32) -> (i32, i32) {
    %c0_i32 = arith.constant 0 : i32
    %c0_i32_0 = arith.constant 0 : i32
    return %c0_i32, %arg0 : i32, i32
  }
  func.func @transform_3(%arg0: i32) -> (i32, i32) {
    %c0_i32 = arith.constant 0 : i32
    %c0_i32_0 = arith.constant 0 : i32
    return %c0_i32, %arg0 : i32, i32
  }
}

</mosaic_0001>

<llo_original>
// kernel: tpu_custom_call.1
$region0: #{tpu_custom_call.1}
  #allocation0 [shape = 'u32[]', space=smem, size = 0x4, offset = 0x4, fixed_abs, tag = 'smem constant byte address 0x4 - core index']
  #allocation1 [shape = 'u32[144,128]{1,0:T(1,128)}', space=vmem, size = 0x12000, scoped, tag = 'internal scratch']
  %s0 = inlined_call_operand.vmem [shape: f32[128,64], index: 0, kind: input, shape index: {}]
  %s1 = inlined_call_operand.vmem [shape: f32[128,1], index: 1, kind: input, shape index: {}]
  %s2 = inlined_call_operand.vmem [shape: f32[64,128], index: 2, kind: input, shape index: {}]
  %s3 = inlined_call_operand.hbm [shape: f32[128,128], index: 3, kind: output, shape index: {}]
  %s4 = sld [smem:[#allocation0]]
  $region22: #{tpu_custom_call.1} parent=0
    _
  %s6 = ssub.s32 1, %s4
  %s7 = scalar_select 0, %s6, %s4
  $region1: #{tpu_custom_call.1} parent=0
    #allocation2 [shape = 'u8[65536]{0}', space=vmem, size = 0x10000, scoped, tag = 'output window, operand 0, single buffered']
    #allocation3 [shape = 's32[1]{0}', space=sflag, size = 0x4, scoped, tag = 'scoped memory for tpu_custom_call.1']
    %8 = vsyncpa [#allocation3], 0
    // Predicated region
    $region2: #{tpu_custom_call.1} parent=1 // pred_check
      _
    $region3: #{tpu_custom_call.1} parent=1 // pred_check_branch
      %10 = sbr.rel (0) target = $region5
    $region4: #{tpu_custom_call.1} parent=1 // pred_region
      _
    $region5: #{tpu_custom_call.1} parent=1 // pred_fallthru
      _
    // Predicated region
    $region6: #{tpu_custom_call.1} parent=1 // pred_check
      _
    $region7: #{tpu_custom_call.1} parent=1 // pred_check_branch
      %12 = sbr.rel (0) target = $region9
    $region8: #{tpu_custom_call.1} parent=1 // pred_region
      _
    $region9: #{tpu_custom_call.1} parent=1 // pred_fallthru
      _
    // Predicated region
    $region10: #{tpu_custom_call.1} parent=1 // pred_check
      _
    $region11: #{tpu_custom_call.1} parent=1 // pred_check_branch
      %14 = sbr.rel (0) target = $region13
    $region12: #{tpu_custom_call.1} parent=1 // pred_region
      _
    $region13: #{tpu_custom_call.1} parent=1 // pred_fallthru
      _
    %v15 = vld [vmem:[%s0] sm:$0xff]
    %v16 = vld [vmem:[%s0 + $0x8] sm:$0xff]
    %v17 = vld [vmem:[%s0 + $0x10] sm:$0xff]
    %v18 = vld [vmem:[%s0 + $0x18] sm:$0xff]
    %v19 = vld [vmem:[%s0 + $0x20] sm:$0xff]
    %v20 = vld [vmem:[%s0 + $0x28] sm:$0xff]
    %v21 = vld [vmem:[%s0 + $0x30] sm:$0xff]
    %v22 = vld [vmem:[%s0 + $0x38] sm:$0xff]
    %v23 = vld [vmem:[%s0 + $0x40] sm:$0xff]
    %v24 = vld [vmem:[%s0 + $0x48] sm:$0xff]
    %v25 = vld [vmem:[%s0 + $0x50] sm:$0xff]
    %v26 = vld [vmem:[%s0 + $0x58] sm:$0xff]
    %v27 = vld [vmem:[%s0 + $0x60] sm:$0xff]
    %v28 = vld [vmem:[%s0 + $0x68] sm:$0xff]
    %v29 = vld [vmem:[%s0 + $0x70] sm:$0xff]
    %v30 = vld [vmem:[%s0 + $0x78] sm:$0xff]
    %v31 = vld [vmem:[%s2] sm:$0xff]
    %v32 = vld [vmem:[%s2 + $0x8] sm:$0xff]
    %v33 = vld [vmem:[%s2 + $0x10] sm:$0xff]
    %v34 = vld [vmem:[%s2 + $0x18] sm:$0xff]
    %v35 = vld [vmem:[%s2 + $0x20] sm:$0xff]
    %v36 = vld [vmem:[%s2 + $0x28] sm:$0xff]
    %v37 = vld [vmem:[%s2 + $0x30] sm:$0xff]
    %v38 = vld [vmem:[%s2 + $0x38] sm:$0xff]
    %v39 = vld [vmem:[%s1] sm:$0xff]
    %v40 = vld [vmem:[%s1 + $0x8] sm:$0xff]
    %v41 = vld [vmem:[%s1 + $0x10] sm:$0xff]
    %v42 = vld [vmem:[%s1 + $0x18] sm:$0xff]
    %v43 = vld [vmem:[%s1 + $0x20] sm:$0xff]
    %v44 = vld [vmem:[%s1 + $0x28] sm:$0xff]
    %v45 = vld [vmem:[%s1 + $0x30] sm:$0xff]
    %v46 = vld [vmem:[%s1 + $0x38] sm:$0xff]
    %v47 = vld [vmem:[%s1 + $0x40] sm:$0xff]
    %v48 = vld [vmem:[%s1 + $0x48] sm:$0xff]
    %v49 = vld [vmem:[%s1 + $0x50] sm:$0xff]
    %v50 = vld [vmem:[%s1 + $0x58] sm:$0xff]
    %v51 = vld [vmem:[%s1 + $0x60] sm:$0xff]
    %v52 = vld [vmem:[%s1 + $0x68] sm:$0xff]
    %v53 = vld [vmem:[%s1 + $0x70] sm:$0xff]
    %v54 = vld [vmem:[%s1 + $0x78] sm:$0xff]
    %56 = vset.pattern.permute.xlu0 0
    %57 = vperm.xlu0 %56, %v39
    %v58 = vpop.permute.xlu0 %57
    %61 = vset.pattern.permute.xlu0 0
    %62 = vperm.xlu0 %61, %v40
    %v63 = vpop.permute.xlu0 %62
    %66 = vset.pattern.permute.xlu0 0
    %67 = vperm.xlu0 %66, %v41
    %v68 = vpop.permute.xlu0 %67
    %71 = vset.pattern.permute.xlu0 0
    %72 = vperm.xlu0 %71, %v42
    %v73 = vpop.permute.xlu0 %72
    %76 = vset.pattern.permute.xlu0 0
    %77 = vperm.xlu0 %76, %v43
    %v78 = vpop.permute.xlu0 %77
    %81 = vset.pattern.permute.xlu0 0
    %82 = vperm.xlu0 %81, %v44
    %v83 = vpop.permute.xlu0 %82
    %86 = vset.pattern.permute.xlu0 0
    %87 = vperm.xlu0 %86, %v45
    %v88 = vpop.permute.xlu0 %87
    %91 = vset.pattern.permute.xlu0 0
    %92 = vperm.xlu0 %91, %v46
    %v93 = vpop.permute.xlu0 %92
    %96 = vset.pattern.permute.xlu0 0
    %97 = vperm.xlu0 %96, %v47
    %v98 = vpop.permute.xlu0 %97
    %101 = vset.pattern.permute.xlu0 0
    %102 = vperm.xlu0 %101, %v48
    %v103 = vpop.permute.xlu0 %102
    %106 = vset.pattern.permute.xlu0 0
    %107 = vperm.xlu0 %106, %v49
    %v108 = vpop.permute.xlu0 %107
    %111 = vset.pattern.permute.xlu0 0
    %112 = vperm.xlu0 %111, %v50
    %v113 = vpop.permute.xlu0 %112
    %116 = vset.pattern.permute.xlu0 0
    %117 = vperm.xlu0 %116, %v51
    %v118 = vpop.permute.xlu0 %117
    %121 = vset.pattern.permute.xlu0 0
    %122 = vperm.xlu0 %121, %v52
    %v123 = vpop.permute.xlu0 %122
    %126 = vset.pattern.permute.xlu0 0
    %127 = vperm.xlu0 %126, %v53
    %v128 = vpop.permute.xlu0 %127
    %131 = vset.pattern.permute.xlu0 0
    %132 = vperm.xlu0 %131, %v54
    %v133 = vpop.permute.xlu0 %132
    %vm135 = vcmask 523264
    %v137 = vsel %vm135, %v15, 0
    %v140 = vsel %vm135, %v16, 0
    %v143 = vsel %vm135, %v17, 0
    %v146 = vsel %vm135, %v18, 0
    %v149 = vsel %vm135, %v19, 0
    %v152 = vsel %vm135, %v20, 0
    %v155 = vsel %vm135, %v21, 0
    %v158 = vsel %vm135, %v22, 0
    %v161 = vsel %vm135, %v23, 0
    %v164 = vsel %vm135, %v24, 0
    %v167 = vsel %vm135, %v25, 0
    %v170 = vsel %vm135, %v26, 0
    %v173 = vsel %vm135, %v27, 0
    %v176 = vsel %vm135, %v28, 0
    %v179 = vsel %vm135, %v29, 0
    %v182 = vsel %vm135, %v30, 0
    %184 = vmatprep.subr.mxu0 0.0
    %185 = vmatpush1.msra.mxu0 %v31
    %186 = vmatprep.subr.mxu0 0.0
    %187 = vmatpush1.msra.mxu0 %v32
    %188 = vmatprep.subr.mxu0 0.0
    %189 = vmatpush1.msra.mxu0 %v33
    %190 = vmatprep.subr.mxu0 0.0
    %191 = vmatpush1.msra.mxu0 %v34
    %192 = vmatprep.subr.mxu0 0.0
    %193 = vmatpush1.msra.mxu0 %v35
    %194 = vmatprep.subr.mxu0 0.0
    %195 = vmatpush1.msra.mxu0 %v36
    %196 = vmatprep.subr.mxu0 0.0
    %197 = vmatpush1.msra.mxu0 %v37
    %198 = vmatprep.subr.mxu0 0.0
    %199 = vmatpush1.msra.mxu0 %v38
    %200 = vmatprep.subr.mxu0 0.0
    %201 = vmatpush1.msra.mxu0 0.0
    %202 = vmatprep.subr.mxu0 0.0
    %203 = vmatpush1.msra.mxu0 0.0
    %204 = vmatprep.subr.mxu0 0.0
    %205 = vmatpush1.msra.mxu0 0.0
    %206 = vmatprep.subr.mxu0 0.0
    %207 = vmatpush1.msra.mxu0 0.0
    %208 = vmatprep.subr.mxu0 0.0
    %209 = vmatpush1.msra.mxu0 0.0
    %210 = vmatprep.subr.mxu0 0.0
    %211 = vmatpush1.msra.mxu0 0.0
    %212 = vmatprep.subr.mxu0 0.0
    %213 = vmatpush1.msra.mxu0 0.0
    %214 = vmatprep.subr.mxu0 0.0
    %215 = vmatpush1.msra.mxu0 0.0
    %216 = vmatprep.subr.mxu0 0.0
    %217 = vmatpush1.msra.mxu0 0.0
    %218 = vmatprep.subr.mxu0 0.0
    %219 = vmatpush1.msra.mxu0 0.0
    %220 = vmatprep.subr.mxu0 0.0
    %221 = vmatpush1.msra.mxu0 0.0
    %222 = vmatprep.subr.mxu0 0.0
    %223 = vmatpush1.msra.mxu0 0.0
    %224 = vmatprep.subr.mxu0 0.0
    %225 = vmatpush1.msra.mxu0 0.0
    %226 = vmatprep.subr.mxu0 0.0
    %227 = vmatpush1.msra.mxu0 0.0
    %228 = vmatprep.subr.mxu0 0.0
    %229 = vmatpush1.msra.mxu0 0.0
    %230 = vmatprep.subr.mxu0 0.0
    %231 = vmatpush1.msra.mxu0 0.0
    %232 = vmatprep.subr.mxu0 0.0
    %233 = vmatpush1.msra.mxu0 0.0
    %234 = vmatprep.subr.mxu0 0.0
    %235 = vmatpush1.msra.mxu0 0.0
    %236 = vmatprep.subr.mxu0 0.0
    %237 = vmatpush1.msra.mxu0 0.0
    %238 = vmatprep.subr.mxu0 0.0
    %239 = vmatpush1.msra.mxu0 0.0
    %240 = vmatprep.subr.mxu0 0.0
    %241 = vmatpush1.msra.mxu0 0.0
    %242 = vmatprep.subr.mxu0 0.0
    %243 = vmatpush1.msra.mxu0 0.0
    %244 = vmatprep.subr.mxu0 0.0
    %245 = vmatpush1.msra.mxu0 0.0
    %246 = vmatprep.subr.mxu0 0.0
    %247 = vmatpush1.msra.mxu0 0.0
    %248 = vmatprep.mubr.f32.mxu0 0.0
    %249 = vmatmul.mubr.f32.gmra.mrb[0].mxu0 %v137
    %v250 = vpop.f32.mrb[0].mxu0
    %v251 = vadd.f32 %v58, %v250
    %v252 = vpop.f32.mrb[0].mxu0
    %253 = vmatprep.mubr.f32.mxu0 0.0
    %254 = vmatmul.mubr.f32.gmra.mrb[0].mxu0 %v140
    %v255 = vpop.f32.mrb[0].mxu0
    %v256 = vadd.f32 %v63, %v255
    %v257 = vpop.f32.mrb[0].mxu0
    %258 = vmatprep.mubr.f32.mxu0 0.0
    %259 = vmatmul.mubr.f32.gmra.mrb[0].mxu0 %v143
    %v260 = vpop.f32.mrb[0].mxu0
    %v261 = vadd.f32 %v68, %v260
    %v262 = vpop.f32.mrb[0].mxu0
    %263 = vmatprep.mubr.f32.mxu0 0.0
    %264 = vmatmul.mubr.f32.gmra.mrb[0].mxu0 %v146
    %v265 = vpop.f32.mrb[0].mxu0
    %v266 = vadd.f32 %v73, %v265
    %v267 = vpop.f32.mrb[0].mxu0
    %268 = vmatprep.mubr.f32.mxu0 0.0
    %269 = vmatmul.mubr.f32.gmra.mrb[0].mxu0 %v149
    %v270 = vpop.f32.mrb[0].mxu0
    %v271 = vadd.f32 %v78, %v270
    %v272 = vpop.f32.mrb[0].mxu0
    %273 = vmatprep.mubr.f32.mxu0 0.0
    %274 = vmatmul.mubr.f32.gmra.mrb[0].mxu0 %v152
    %v275 = vpop.f32.mrb[0].mxu0
    %v276 = vadd.f32 %v83, %v275
    %v277 = vpop.f32.mrb[0].mxu0
    %278 = vmatprep.mubr.f32.mxu0 0.0
    %279 = vmatmul.mubr.f32.gmra.mrb[0].mxu0 %v155
    %v280 = vpop.f32.mrb[0].mxu0
    %v281 = vadd.f32 %v88, %v280
    %v282 = vpop.f32.mrb[0].mxu0
    %283 = vmatprep.mubr.f32.mxu0 0.0
    %284 = vmatmul.mubr.f32.gmra.mrb[0].mxu0 %v158
    %v285 = vpop.f32.mrb[0].mxu0
    %v286 = vadd.f32 %v93, %v285
    %v287 = vpop.f32.mrb[0].mxu0
    %288 = vmatprep.mubr.f32.mxu0 0.0
    %289 = vmatmul.mubr.f32.gmra.mrb[0].mxu0 %v161
    %v290 = vpop.f32.mrb[0].mxu0
    %v291 = vadd.f32 %v98, %v290
    %v292 = vpop.f32.mrb[0].mxu0
    %293 = vmatprep.mubr.f32.mxu0 0.0
    %294 = vmatmul.mubr.f32.gmra.mrb[0].mxu0 %v164
    %v295 = vpop.f32.mrb[0].mxu0
    %v296 = vadd.f32 %v103, %v295
    %v297 = vpop.f32.mrb[0].mxu0
    %298 = vmatprep.mubr.f32.mxu0 0.0
    %299 = vmatmul.mubr.f32.gmra.mrb[0].mxu0 %v167
    %v300 = vpop.f32.mrb[0].mxu0
    %v301 = vadd.f32 %v108, %v300
    %v302 = vpop.f32.mrb[0].mxu0
    %303 = vmatprep.mubr.f32.mxu0 0.0
    %304 = vmatmul.mubr.f32.gmra.mrb[0].mxu0 %v170
    %v305 = vpop.f32.mrb[0].mxu0
    %v306 = vadd.f32 %v113, %v305
    %v307 = vpop.f32.mrb[0].mxu0
    %308 = vmatprep.mubr.f32.mxu0 0.0
    %309 = vmatmul.mubr.f32.gmra.mrb[0].mxu0 %v173
    %v310 = vpop.f32.mrb[0].mxu0
    %v311 = vadd.f32 %v118, %v310
    %v312 = vpop.f32.mrb[0].mxu0
    %313 = vmatprep.mubr.f32.mxu0 0.0
    %314 = vmatmul.mubr.f32.gmra.mrb[0].mxu0 %v176
    %v315 = vpop.f32.mrb[0].mxu0
    %v316 = vadd.f32 %v123, %v315
    %v317 = vpop.f32.mrb[0].mxu0
    %318 = vmatprep.mubr.f32.mxu0 0.0
    %319 = vmatmul.mubr.f32.gmra.mrb[0].mxu0 %v179
    %v320 = vpop.f32.mrb[0].mxu0
    %v321 = vadd.f32 %v128, %v320
    %v322 = vpop.f32.mrb[0].mxu0
    %323 = vmatprep.mubr.f32.mxu0 0.0
    %324 = vmatmul.mubr.f32.gmra.mrb[0].mxu0 %v182
    %v325 = vpop.f32.mrb[0].mxu0
    %v326 = vadd.f32 %v133, %v325
    %v327 = vpop.f32.mrb[0].mxu0
    %328 = vdwg.mxu0
    %329 = vst [vmem:[#allocation2] sm:$0xff] %v251
    %330 = vst [vmem:[#allocation2 + $0x8] sm:$0xff] %v256
    %331 = vst [vmem:[#allocation2 + $0x10] sm:$0xff] %v261
    %332 = vst [vmem:[#allocation2 + $0x18] sm:$0xff] %v266
    %333 = vst [vmem:[#allocation2 + $0x20] sm:$0xff] %v271
    %334 = vst [vmem:[#allocation2 + $0x28] sm:$0xff] %v276
    %335 = vst [vmem:[#allocation2 + $0x30] sm:$0xff] %v281
    %336 = vst [vmem:[#allocation2 + $0x38] sm:$0xff] %v286
    %337 = vst [vmem:[#allocation2 + $0x40] sm:$0xff] %v291
    %338 = vst [vmem:[#allocation2 + $0x48] sm:$0xff] %v296
    %339 = vst [vmem:[#allocation2 + $0x50] sm:$0xff] %v301
    %340 = vst [vmem:[#allocation2 + $0x58] sm:$0xff] %v306
    %341 = vst [vmem:[#allocation2 + $0x60] sm:$0xff] %v311
    %342 = vst [vmem:[#allocation2 + $0x68] sm:$0xff] %v316
    %343 = vst [vmem:[#allocation2 + $0x70] sm:$0xff] %v321
    %344 = vst [vmem:[#allocation2 + $0x78] sm:$0xff] %v326
    // Predicated region
    $region14: #{tpu_custom_call.1} parent=1 // pred_check
      _
    $region15: #{tpu_custom_call.1} parent=1 // pred_check_branch
      %346 = sbr.rel (0) target = $region17
    $region16: #{tpu_custom_call.1} parent=1 // pred_region
      %s348 = ssub.s32 2048, 2048
      %349 = vsyncadd [#allocation3], %s348
      %s350 = sshll.u32 [#allocation2], 4
      %s351 = int_to_ptr.vmem [resolvable:$true] %s350
      %356 = dma.vmem_to_hbm [thread:$0]  %s351, 2048, %s3, [#allocation3], 128, 128, 8
    $region17: #{tpu_custom_call.1} parent=1 // pred_fallthru
      _
    // Predicated region
    $region18: #{tpu_custom_call.1} parent=1 // pred_check
      _
    $region19: #{tpu_custom_call.1} parent=1 // pred_check_branch
      %358 = sbr.rel (0) target = $region21
    $region20: #{tpu_custom_call.1} parent=1 // pred_region
      %359 = dma.done [#allocation3], 2048
    $region21: #{tpu_custom_call.1} parent=1 // pred_fallthru
      _
    %360 = vsyncpa [#allocation3], 1

</llo_original>
